<compile_context>
chip_gen: v5e
topology: v5e:2x2
jax: 0.10.0
libtpu: 0.0.40
codegen_flags: <defaults>
</compile_context>

<pallas_src>
import jax
import jax.numpy as jnp
import numpy as np
from jax.experimental import pallas as pl
from jax.experimental.pallas import tpu as pltpu

# ---------------- model hyper-parameters (small, deterministic) -------------
INPUT_SIZE = 16
FORECAST_SIZE = 4
HIDDEN_SIZE = 32
HARMONICS = 4            # seasonality coef_size = 2 * HARMONICS = 8
POLY_DEGREE = 2          # trend coef_size = POLY_DEGREE + 1 = 3
BATCH = 2

COEF_S = 2 * HARMONICS   # 8
COEF_T = POLY_DEGREE + 1 # 3

PAD = HIDDEN_SIZE        # padded feature / hidden width (32)
SLAB_ROWS = PAD + 8      # 32 weight rows + 1 bias row + 7 zero rows = 40
FC_COL = INPUT_SIZE      # forecast lanes live in columns 16..19
ONES_COL = PAD - 1       # ones column for first-layer bias folding (31)
MAX_TB = 256             # batch-tile cap (fills MXU M on v6e/v7x, fine on v5e)

# packed slab layer indices
S_W1, S_W2, S_W3, S_HEAD, T_W1, T_W2, T_W3, T_HEAD = range(8)
N_LAYERS = 8


def _round_up(v, m):
    return ((v + m - 1) // m) * m


# ---------------- Pallas kernel ----------------------------------------------
def nbeats_kernel(x_ref, wb_ref, out_ref):
    x = x_ref[...]                                   # (TB, PAD); lane 31 is 1

    def fc(h, idx, relu=True, bias=True):
        y = jnp.dot(h, wb_ref[idx, :PAD, :], preferred_element_type=jnp.float32)
        if bias:
            y = y + wb_ref[idx, PAD:PAD + 1, :]      # (1, PAD) broadcast add
        return jnp.maximum(y, 0.0) if relu else y

    # --- seasonality block (first-layer bias rides the ones column -> MXU) ---
    h = fc(x, S_W1, bias=False)
    h = fc(h, S_W2)
    h = fc(h, S_W3)
    head_s = fc(h, S_HEAD, relu=False)   # cols 0..15 backcast, 16..19 forecast

    # residual: forecast/ones lanes leak into r but only hit zero rows of T_W1
    # (row 31 carries tb1 and must see exactly 1 -> season head col 31 is 0).
    r = x - head_s

    # --- trend block (backcast half is dead in NBeats.forward; dropped) ---
    h = fc(r, T_W1, bias=False)
    h = fc(h, T_W2)
    h = fc(h, T_W3)
    head_t = fc(h, T_HEAD, relu=False)   # forecast at cols 16..19, rest zero

    # full PAD-wide (lane-dense) store; wrapper slices the forecast lanes
    out_ref[...] = head_s + head_t


# ---------------- parameter construction (deterministic) ---------------------
def make_linear(key, in_f, out_f):
    kw, kb = jax.random.split(key)
    lim = 1.0 / np.sqrt(in_f)
    W = jax.random.uniform(kw, (in_f, out_f), jnp.float32, -lim, lim)
    b = jax.random.uniform(kb, (out_f,), jnp.float32, -lim, lim)
    return W, b


def seasonality_basis(harmonics, input_size, forecast_size):
    t_back = np.linspace(0.0, 2.0 * np.pi, input_size, dtype=np.float32)
    t_for = np.linspace(0.0, 2.0 * np.pi, forecast_size, dtype=np.float32)
    F_back = np.vstack(
        [np.sin((h + 1) * t_back) for h in range(harmonics)]
        + [np.cos((h + 1) * t_back) for h in range(harmonics)]).astype(np.float32)
    F_for = np.vstack(
        [np.sin((h + 1) * t_for) for h in range(harmonics)]
        + [np.cos((h + 1) * t_for) for h in range(harmonics)]).astype(np.float32)
    return F_back, F_for


def trend_basis(degree, input_size, forecast_size):
    t_back = np.linspace(-1.0, 1.0, input_size, dtype=np.float32)
    t_for = np.linspace(-1.0, 1.0, forecast_size, dtype=np.float32)
    P_back = np.vstack([t_back ** d for d in range(degree + 1)]).astype(np.float32)
    P_for = np.vstack([t_for ** d for d in range(degree + 1)]).astype(np.float32)
    return P_back, P_for


def make_params(key):
    """Raw (un-fused) parameters, mirroring the PyTorch module."""
    keys = jax.random.split(key, 8)
    p = {}
    p["sW1"], p["sb1"] = make_linear(keys[0], INPUT_SIZE, HIDDEN_SIZE)
    p["sW2"], p["sb2"] = make_linear(keys[1], HIDDEN_SIZE, HIDDEN_SIZE)
    p["sW3"], p["sb3"] = make_linear(keys[2], HIDDEN_SIZE, HIDDEN_SIZE)
    p["sW4"], p["sb4"] = make_linear(keys[3], HIDDEN_SIZE, 2 * COEF_S)
    p["sFb"], p["sFf"] = seasonality_basis(HARMONICS, INPUT_SIZE, FORECAST_SIZE)
    p["tW1"], p["tb1"] = make_linear(keys[4], INPUT_SIZE, HIDDEN_SIZE)
    p["tW2"], p["tb2"] = make_linear(keys[5], HIDDEN_SIZE, HIDDEN_SIZE)
    p["tW3"], p["tb3"] = make_linear(keys[6], HIDDEN_SIZE, HIDDEN_SIZE)
    p["tW4"], p["tb4"] = make_linear(keys[7], HIDDEN_SIZE, 2 * COEF_T)
    p["tPb"], p["tPf"] = trend_basis(POLY_DEGREE, INPUT_SIZE, FORECAST_SIZE)
    return p


def fuse_and_pack(p):
    """Host-side: fold basis into heads, fold first-layer biases into a ones
    column, drop dead params, pack everything into ONE (8, 40, 32) slab."""
    def npf(a):
        return np.asarray(a, dtype=np.float32)

    slab = np.zeros((N_LAYERS, SLAB_ROWS, PAD), np.float32)

    def put(idx, W, b=None):
        W = npf(W)
        slab[idx, :W.shape[0], :W.shape[1]] = W
        if b is not None:
            b = npf(b)
            slab[idx, PAD, :b.shape[0]] = b

    # seasonality block: first-layer bias goes into weight row 31 (ones column)
    sW1p = np.zeros((PAD, PAD), np.float32)
    sW1p[:INPUT_SIZE, :] = npf(p["sW1"])
    sW1p[ONES_COL, :] = npf(p["sb1"])
    put(S_W1, sW1p)
    put(S_W2, p["sW2"], p["sb2"])
    put(S_W3, p["sW3"], p["sb3"])

    # fused seasonality head: backcast in cols 0..15, forecast in cols 16..19
    sHW = np.zeros((PAD, PAD), np.float32)
    sHW[:, :INPUT_SIZE] = npf(p["sW4"])[:, :COEF_S] @ npf(p["sFb"])
    sHW[:, FC_COL:FC_COL + FORECAST_SIZE] = npf(p["sW4"])[:, COEF_S:] @ npf(p["sFf"])
    sHb = np.zeros((PAD,), np.float32)
    sHb[:INPUT_SIZE] = npf(p["sb4"])[:COEF_S] @ npf(p["sFb"])
    sHb[FC_COL:FC_COL + FORECAST_SIZE] = npf(p["sb4"])[COEF_S:] @ npf(p["sFf"])
    put(S_HEAD, sHW, sHb)

    # trend block (trend backcast + P_back are dead in NBeats.forward -> dropped)
    tW1p = np.zeros((PAD, PAD), np.float32)
    tW1p[:INPUT_SIZE, :] = npf(p["tW1"])
    tW1p[ONES_COL, :] = npf(p["tb1"])
    put(T_W1, tW1p)
    put(T_W2, p["tW2"], p["tb2"])
    put(T_W3, p["tW3"], p["tb3"])

    tHW = np.zeros((PAD, PAD), np.float32)
    tHW[:, FC_COL:FC_COL + FORECAST_SIZE] = npf(p["tW4"])[:, COEF_T:] @ npf(p["tPf"])
    tHb = np.zeros((PAD,), np.float32)
    tHb[FC_COL:FC_COL + FORECAST_SIZE] = npf(p["tb4"])[COEF_T:] @ npf(p["tPf"])
    put(T_HEAD, tHW, tHb)

    return jnp.asarray(slab)                         # (8, 40, 32) single DMA


# ---------------- wrapper -----------------------------------------------------
def nbeats_forward(x, wb_slab):
    B = x.shape[0]
    x2d = x.reshape(B, -1).astype(jnp.float32)       # glue: like x.view(B, -1)
    assert x2d.shape[1] == INPUT_SIZE

    # adaptive batch tile: 8 rows at B=2, up to 256 rows for big batches
    TB = min(_round_up(B, 8), MAX_TB)
    Bp = _round_up(B, TB)

    # features 16 -> 32 with exact zero padding, plus a ones column at lane 31
    # that carries the first-layer biases through the MXU.
    x_pad = jnp.pad(x2d, ((0, Bp - B), (0, PAD - INPUT_SIZE)))
    x_pad = x_pad.at[:, ONES_COL].set(1.0)

    out = pl.pallas_call(
        nbeats_kernel,
        out_shape=jax.ShapeDtypeStruct((Bp, PAD), jnp.float32),
        grid=(Bp // TB,),
        in_specs=[
            pl.BlockSpec((TB, PAD), lambda i: (i, 0)),                 # x tile
            pl.BlockSpec((N_LAYERS, SLAB_ROWS, PAD), lambda i: (0, 0, 0)),  # params
        ],
        out_specs=pl.BlockSpec((TB, PAD), lambda i: (i, 0)),
        compiler_params=pltpu.CompilerParams(
            dimension_semantics=("parallel",)),      # shards across TCs when grid > 1
    )(x_pad, wb_slab)

    # forecast lanes live at columns 16..19 of the lane-dense output block
    return out[:B, FC_COL:FC_COL + FORECAST_SIZE]


# ---------------- pure-JAX reference (un-fused, mirrors PyTorch) --------------
def nbeats_reference(x, p):
    x2d = x.reshape(x.shape[0], -1).astype(jnp.float32)

    def block(inp, W1, b1, W2, b2, W3, b3, W4, b4, Fb, Ff, coef):
        h = jnp.maximum(inp @ W1 + b1, 0.0)
        h = jnp.maximum(h @ W2 + b2, 0.0)
        h = jnp.maximum(h @ W3 + b3, 0.0)
        theta = h @ W4 + b4
        backcast = theta[:, :coef] @ jnp.asarray(Fb)
        forecast = theta[:, coef:] @ jnp.asarray(Ff)
        return backcast, forecast

    b1_, f1 = block(x2d, p["sW1"], p["sb1"], p["sW2"], p["sb2"],
                    p["sW3"], p["sb3"], p["sW4"], p["sb4"],
                    p["sFb"], p["sFf"], COEF_S)
    res = x2d - b1_
    _, f2 = block(res, p["tW1"], p["tb1"], p["tW2"], p["tb2"],
                  p["tW3"], p["tb3"], p["tW4"], p["tb4"],
                  p["tPb"], p["tPf"], COEF_T)
    return f1 + f2


# ---------------- main --------------------------------------------------------
if __name__ == "__main__":
    key = jax.random.PRNGKey(0)
    kx, kp = jax.random.split(key)
    # input shaped (B, 4, 2, 2) -> flattened to (B, 16) inside wrapper
    x = jax.random.normal(kx, (BATCH, 4, 2, 2), jnp.float32)
    raw_params = make_params(kp)
    wb_slab = fuse_and_pack(raw_params)

    out = nbeats_forward(x, wb_slab)
    out = jax.block_until_ready(out)

    ref = nbeats_reference(x, raw_params)
    assert out.shape == (BATCH, FORECAST_SIZE)
    # slightly looser tolerance: basis/bias folding reassociates f32 matmuls
    np.testing.assert_allclose(np.asarray(out), np.asarray(ref), rtol=1e-3, atol=1e-3)

    print("KERNEL_OK")
</pallas_src>

<mosaic_0001>
module attributes {stable_mosaic.version = 11 : i64} {
  func.func @nbeats_kernel(%arg0: i32, %arg1: memref<8x32xf32, #tpu.memory_space<vmem>>, %arg2: memref<8x40x32xf32, #tpu.memory_space<vmem>>, %arg3: memref<8x32xf32, #tpu.memory_space<vmem>>) attributes {dimension_semantics = [#tpu.dimension_semantics<parallel>], iteration_bounds = array<i64: 1>, scalar_prefetch = 0 : i64, scratch_operands = 0 : i64, tpu.core_type = #tpu.core_type<tc>, window_params = [{transform_indices = @transform_0, window_bounds = array<i64: 8, 32>}, {pipeline_mode = #tpu.pipeline_mode<synchronous>, transform_indices = @transform_1, window_bounds = array<i64: 8, 40, 32>}, {transform_indices = @transform_2, window_bounds = array<i64: 8, 32>}]} {
    %c0 = arith.constant 0 : index
    %c0_0 = arith.constant 0 : index
    %0 = vector.load %arg1[%c0, %c0_0] : memref<8x32xf32, #tpu.memory_space<vmem>>, vector<8x32xf32>
    %c0_1 = arith.constant 0 : index
    %c0_2 = arith.constant 0 : index
    %c0_3 = arith.constant 0 : index
    %1 = vector.load %arg2[%c0_1, %c0_2, %c0_3] : memref<8x40x32xf32, #tpu.memory_space<vmem>>, vector<1x32x32xf32>
    %2 = vector.shape_cast %1 : vector<1x32x32xf32> to vector<32x32xf32>
    %cst = arith.constant dense<0.000000e+00> : vector<8x32xf32>
    %3 = tpu.matmul %0, %2, %cst {dimension_numbers = #tpu.dot_dimension_numbers<[1], [0], [0], [1], [0, 0, 1, 1], [], []>} : vector<8x32xf32>, vector<32x32xf32>, vector<8x32xf32> -> vector<8x32xf32>
    %cst_4 = arith.constant 0.000000e+00 : f32
    %4 = vector.broadcast %cst_4 : f32 to vector<8x32xf32>
    %5 = arith.maximumf %3, %4 : vector<8x32xf32>
    %c1 = arith.constant 1 : index
    %c0_5 = arith.constant 0 : index
    %c0_6 = arith.constant 0 : index
    %6 = vector.load %arg2[%c1, %c0_5, %c0_6] : memref<8x40x32xf32, #tpu.memory_space<vmem>>, vector<1x32x32xf32>
    %7 = vector.shape_cast %6 : vector<1x32x32xf32> to vector<32x32xf32>
    %cst_7 = arith.constant dense<0.000000e+00> : vector<8x32xf32>
    %8 = tpu.matmul %5, %7, %cst_7 {dimension_numbers = #tpu.dot_dimension_numbers<[1], [0], [0], [1], [0, 0, 1, 1], [], []>} : vector<8x32xf32>, vector<32x32xf32>, vector<8x32xf32> -> vector<8x32xf32>
    %c1_8 = arith.constant 1 : index
    %c32 = arith.constant 32 : index
    %c0_9 = arith.constant 0 : index
    %9 = vector.load %arg2[%c1_8, %c32, %c0_9] : memref<8x40x32xf32, #tpu.memory_space<vmem>>, vector<1x1x32xf32>
    %10 = vector.shape_cast %9 : vector<1x1x32xf32> to vector<1x32xf32>
    %11 = vector.broadcast %10 : vector<1x32xf32> to vector<8x32xf32>
    %12 = arith.addf %8, %11 : vector<8x32xf32>
    %cst_10 = arith.constant 0.000000e+00 : f32
    %13 = vector.broadcast %cst_10 : f32 to vector<8x32xf32>
    %14 = arith.maximumf %12, %13 : vector<8x32xf32>
    %c2 = arith.constant 2 : index
    %c0_11 = arith.constant 0 : index
    %c0_12 = arith.constant 0 : index
    %15 = vector.load %arg2[%c2, %c0_11, %c0_12] : memref<8x40x32xf32, #tpu.memory_space<vmem>>, vector<1x32x32xf32>
    %16 = vector.shape_cast %15 : vector<1x32x32xf32> to vector<32x32xf32>
    %cst_13 = arith.constant dense<0.000000e+00> : vector<8x32xf32>
    %17 = tpu.matmul %14, %16, %cst_13 {dimension_numbers = #tpu.dot_dimension_numbers<[1], [0], [0], [1], [0, 0, 1, 1], [], []>} : vector<8x32xf32>, vector<32x32xf32>, vector<8x32xf32> -> vector<8x32xf32>
    %c2_14 = arith.constant 2 : index
    %c32_15 = arith.constant 32 : index
    %c0_16 = arith.constant 0 : index
    %18 = vector.load %arg2[%c2_14, %c32_15, %c0_16] : memref<8x40x32xf32, #tpu.memory_space<vmem>>, vector<1x1x32xf32>
    %19 = vector.shape_cast %18 : vector<1x1x32xf32> to vector<1x32xf32>
    %20 = vector.broadcast %19 : vector<1x32xf32> to vector<8x32xf32>
    %21 = arith.addf %17, %20 : vector<8x32xf32>
    %cst_17 = arith.constant 0.000000e+00 : f32
    %22 = vector.broadcast %cst_17 : f32 to vector<8x32xf32>
    %23 = arith.maximumf %21, %22 : vector<8x32xf32>
    %c3 = arith.constant 3 : index
    %c0_18 = arith.constant 0 : index
    %c0_19 = arith.constant 0 : index
    %24 = vector.load %arg2[%c3, %c0_18, %c0_19] : memref<8x40x32xf32, #tpu.memory_space<vmem>>, vector<1x32x32xf32>
    %25 = vector.shape_cast %24 : vector<1x32x32xf32> to vector<32x32xf32>
    %cst_20 = arith.constant dense<0.000000e+00> : vector<8x32xf32>
    %26 = tpu.matmul %23, %25, %cst_20 {dimension_numbers = #tpu.dot_dimension_numbers<[1], [0], [0], [1], [0, 0, 1, 1], [], []>} : vector<8x32xf32>, vector<32x32xf32>, vector<8x32xf32> -> vector<8x32xf32>
    %c3_21 = arith.constant 3 : index
    %c32_22 = arith.constant 32 : index
    %c0_23 = arith.constant 0 : index
    %27 = vector.load %arg2[%c3_21, %c32_22, %c0_23] : memref<8x40x32xf32, #tpu.memory_space<vmem>>, vector<1x1x32xf32>
    %28 = vector.shape_cast %27 : vector<1x1x32xf32> to vector<1x32xf32>
    %29 = vector.broadcast %28 : vector<1x32xf32> to vector<8x32xf32>
    %30 = arith.addf %26, %29 : vector<8x32xf32>
    %31 = arith.subf %0, %30 : vector<8x32xf32>
    %c4 = arith.constant 4 : index
    %c0_24 = arith.constant 0 : index
    %c0_25 = arith.constant 0 : index
    %32 = vector.load %arg2[%c4, %c0_24, %c0_25] : memref<8x40x32xf32, #tpu.memory_space<vmem>>, vector<1x32x32xf32>
    %33 = vector.shape_cast %32 : vector<1x32x32xf32> to vector<32x32xf32>
    %cst_26 = arith.constant dense<0.000000e+00> : vector<8x32xf32>
    %34 = tpu.matmul %31, %33, %cst_26 {dimension_numbers = #tpu.dot_dimension_numbers<[1], [0], [0], [1], [0, 0, 1, 1], [], []>} : vector<8x32xf32>, vector<32x32xf32>, vector<8x32xf32> -> vector<8x32xf32>
    %cst_27 = arith.constant 0.000000e+00 : f32
    %35 = vector.broadcast %cst_27 : f32 to vector<8x32xf32>
    %36 = arith.maximumf %34, %35 : vector<8x32xf32>
    %c5 = arith.constant 5 : index
    %c0_28 = arith.constant 0 : index
    %c0_29 = arith.constant 0 : index
    %37 = vector.load %arg2[%c5, %c0_28, %c0_29] : memref<8x40x32xf32, #tpu.memory_space<vmem>>, vector<1x32x32xf32>
    %38 = vector.shape_cast %37 : vector<1x32x32xf32> to vector<32x32xf32>
    %cst_30 = arith.constant dense<0.000000e+00> : vector<8x32xf32>
    %39 = tpu.matmul %36, %38, %cst_30 {dimension_numbers = #tpu.dot_dimension_numbers<[1], [0], [0], [1], [0, 0, 1, 1], [], []>} : vector<8x32xf32>, vector<32x32xf32>, vector<8x32xf32> -> vector<8x32xf32>
    %c5_31 = arith.constant 5 : index
    %c32_32 = arith.constant 32 : index
    %c0_33 = arith.constant 0 : index
    %40 = vector.load %arg2[%c5_31, %c32_32, %c0_33] : memref<8x40x32xf32, #tpu.memory_space<vmem>>, vector<1x1x32xf32>
    %41 = vector.shape_cast %40 : vector<1x1x32xf32> to vector<1x32xf32>
    %42 = vector.broadcast %41 : vector<1x32xf32> to vector<8x32xf32>
    %43 = arith.addf %39, %42 : vector<8x32xf32>
    %cst_34 = arith.constant 0.000000e+00 : f32
    %44 = vector.broadcast %cst_34 : f32 to vector<8x32xf32>
    %45 = arith.maximumf %43, %44 : vector<8x32xf32>
    %c6 = arith.constant 6 : index
    %c0_35 = arith.constant 0 : index
    %c0_36 = arith.constant 0 : index
    %46 = vector.load %arg2[%c6, %c0_35, %c0_36] : memref<8x40x32xf32, #tpu.memory_space<vmem>>, vector<1x32x32xf32>
    %47 = vector.shape_cast %46 : vector<1x32x32xf32> to vector<32x32xf32>
    %cst_37 = arith.constant dense<0.000000e+00> : vector<8x32xf32>
    %48 = tpu.matmul %45, %47, %cst_37 {dimension_numbers = #tpu.dot_dimension_numbers<[1], [0], [0], [1], [0, 0, 1, 1], [], []>} : vector<8x32xf32>, vector<32x32xf32>, vector<8x32xf32> -> vector<8x32xf32>
    %c6_38 = arith.constant 6 : index
    %c32_39 = arith.constant 32 : index
    %c0_40 = arith.constant 0 : index
    %49 = vector.load %arg2[%c6_38, %c32_39, %c0_40] : memref<8x40x32xf32, #tpu.memory_space<vmem>>, vector<1x1x32xf32>
    %50 = vector.shape_cast %49 : vector<1x1x32xf32> to vector<1x32xf32>
    %51 = vector.broadcast %50 : vector<1x32xf32> to vector<8x32xf32>
    %52 = arith.addf %48, %51 : vector<8x32xf32>
    %cst_41 = arith.constant 0.000000e+00 : f32
    %53 = vector.broadcast %cst_41 : f32 to vector<8x32xf32>
    %54 = arith.maximumf %52, %53 : vector<8x32xf32>
    %c7 = arith.constant 7 : index
    %c0_42 = arith.constant 0 : index
    %c0_43 = arith.constant 0 : index
    %55 = vector.load %arg2[%c7, %c0_42, %c0_43] : memref<8x40x32xf32, #tpu.memory_space<vmem>>, vector<1x32x32xf32>
    %56 = vector.shape_cast %55 : vector<1x32x32xf32> to vector<32x32xf32>
    %cst_44 = arith.constant dense<0.000000e+00> : vector<8x32xf32>
    %57 = tpu.matmul %54, %56, %cst_44 {dimension_numbers = #tpu.dot_dimension_numbers<[1], [0], [0], [1], [0, 0, 1, 1], [], []>} : vector<8x32xf32>, vector<32x32xf32>, vector<8x32xf32> -> vector<8x32xf32>
    %c7_45 = arith.constant 7 : index
    %c32_46 = arith.constant 32 : index
    %c0_47 = arith.constant 0 : index
    %58 = vector.load %arg2[%c7_45, %c32_46, %c0_47] : memref<8x40x32xf32, #tpu.memory_space<vmem>>, vector<1x1x32xf32>
    %59 = vector.shape_cast %58 : vector<1x1x32xf32> to vector<1x32xf32>
    %60 = vector.broadcast %59 : vector<1x32xf32> to vector<8x32xf32>
    %61 = arith.addf %57, %60 : vector<8x32xf32>
    %62 = arith.addf %30, %61 : vector<8x32xf32>
    %c0_48 = arith.constant 0 : index
    %c0_49 = arith.constant 0 : index
    %63 = vector.load %arg3[%c0_48, %c0_49] : memref<8x32xf32, #tpu.memory_space<vmem>>, vector<8x32xf32>
    tpu.vector_store %arg3[%c0_48, %c0_49], %62 {strides = array<i32>} : memref<8x32xf32, #tpu.memory_space<vmem>>, vector<8x32xf32>,
    return
  }
  func.func @transform_0(%arg0: i32) -> (i32, i32) {
    %c0_i32 = arith.constant 0 : i32
    %c0_i32_0 = arith.constant 0 : i32
    return %arg0, %c0_i32 : i32, i32
  }
  func.func @transform_1(%arg0: i32) -> (i32, i32, i32) {
    %c0_i32 = arith.constant 0 : i32
    %c0_i32_0 = arith.constant 0 : i32
    %c0_i32_1 = arith.constant 0 : i32
    %c0_i32_2 = arith.constant 0 : i32
    return %c0_i32, %c0_i32_0, %c0_i32_1 : i32, i32, i32
  }
  func.func @transform_2(%arg0: i32) -> (i32, i32) {
    %c0_i32 = arith.constant 0 : i32
    %c0_i32_0 = arith.constant 0 : i32
    return %arg0, %c0_i32 : i32, i32
  }
}

</mosaic_0001>

<llo_original>
// kernel: tpu_custom_call.1
$region0: #{tpu_custom_call.1}
  #allocation0 [shape = 'u32[]', space=smem, size = 0x4, offset = 0x4, fixed_abs, tag = 'smem constant byte address 0x4 - core index']
  #allocation1 [shape = 'u32[72,128]{1,0:T(1,128)}', space=vmem, size = 0x9000, scoped, tag = 'internal scratch']
  %s0 = inlined_call_operand.vmem [shape: f32[8,32], index: 0, kind: input, shape index: {}]
  %s1 = inlined_call_operand.vmem [shape: f32[8,40,32], index: 1, kind: input, shape index: {}]
  %s2 = inlined_call_operand.hbm [shape: f32[8,32], index: 2, kind: output, shape index: {}]
  %s3 = sld [smem:[#allocation0]]
  $region18: #{tpu_custom_call.1} parent=0
    _
  %s5 = ssub.s32 1, %s3
  %s6 = scalar_select 0, %s5, %s3
  $region1: #{tpu_custom_call.1} parent=0
    #allocation2 [shape = 'u8[4096]{0}', space=vmem, size = 0x1000, scoped, tag = 'output window, operand 0, single buffered']
    #allocation3 [shape = 's32[1]{0}', space=sflag, size = 0x4, scoped, tag = 'scoped memory for tpu_custom_call.1']
    %7 = vsyncpa [#allocation3], 0
    // Predicated region
    $region2: #{tpu_custom_call.1} parent=1 // pred_check
      _
    $region3: #{tpu_custom_call.1} parent=1 // pred_check_branch
      %9 = sbr.rel (0) target = $region5
    $region4: #{tpu_custom_call.1} parent=1 // pred_region
      _
    $region5: #{tpu_custom_call.1} parent=1 // pred_fallthru
      _
    // Predicated region
    $region6: #{tpu_custom_call.1} parent=1 // pred_check
      _
    $region7: #{tpu_custom_call.1} parent=1 // pred_check_branch
      %11 = sbr.rel (0) target = $region9
    $region8: #{tpu_custom_call.1} parent=1 // pred_region
      _
    $region9: #{tpu_custom_call.1} parent=1 // pred_fallthru
      _
    %v12 = vld [vmem:[%s0] sm:$0xff]
    %v13 = vld [vmem:[%s1] sm:$0xff]
    %v14 = vld [vmem:[%s1 + $0x8] sm:$0xff]
    %v15 = vld [vmem:[%s1 + $0x10] sm:$0xff]
    %v16 = vld [vmem:[%s1 + $0x18] sm:$0xff]
    %vm17 = vcmask 261120
    %v19 = vsel %vm17, %v12, 0
    %21 = vmatpush.msra.mxu0 0.0
    %22 = vmatpush.msra.mxu0 0.0
    %23 = vmatpush.msra.mxu0 0.0
    %24 = vmatpush.msra.mxu0 0.0
    %25 = vmatpush.msra.mxu0 0.0
    %26 = vmatpush.msra.mxu0 0.0
    %27 = vmatpush.msra.mxu0 0.0
    %28 = vmatpush.msra.mxu0 0.0
    %29 = vmatpush.msra.mxu0 0.0
    %30 = vmatpush.msra.mxu0 0.0
    %31 = vmatpush.msra.mxu0 0.0
    %32 = vmatpush.msra.mxu0 0.0
    %33 = vmatpush.msra.mxu0 %v16
    %34 = vmatpush.msra.mxu0 %v15
    %35 = vmatpush.msra.mxu0 %v14
    %36 = vmatpush.msra.mxu0 %v13
    %37 = vmatmul.f32.gmra.mxu0 %v19
    %v38 = vpop.f32.mrf.mxu0
    %v39 = vadd.f32 0.0, %v38
    %40 = vdwg.mxu0
    %v41 = vmax.f32 %v39, 0.0
    %s42 = scalar_lea.vmem %s1, 40
    %v43 = vld [vmem:[%s42] sm:$0xff]
    %v44 = vld [vmem:[%s42 + $0x8] sm:$0xff]
    %v45 = vld [vmem:[%s42 + $0x10] sm:$0xff]
    %v46 = vld [vmem:[%s42 + $0x18] sm:$0xff]
    %v47 = vld [vmem:[%s42 + $0x20] sm:$0x1]
    %v48 = vperm.slane %v47, 0
    %v50 = vsel %vm17, %v41, 0
    %52 = vmatpush.msra.mxu0 0.0
    %53 = vmatpush.msra.mxu0 0.0
    %54 = vmatpush.msra.mxu0 0.0
    %55 = vmatpush.msra.mxu0 0.0
    %56 = vmatpush.msra.mxu0 0.0
    %57 = vmatpush.msra.mxu0 0.0
    %58 = vmatpush.msra.mxu0 0.0
    %59 = vmatpush.msra.mxu0 0.0
    %60 = vmatpush.msra.mxu0 0.0
    %61 = vmatpush.msra.mxu0 0.0
    %62 = vmatpush.msra.mxu0 0.0
    %63 = vmatpush.msra.mxu0 0.0
    %64 = vmatpush.msra.mxu0 %v46
    %65 = vmatpush.msra.mxu0 %v45
    %66 = vmatpush.msra.mxu0 %v44
    %67 = vmatpush.msra.mxu0 %v43
    %68 = vmatmul.f32.gmra.mxu0 %v50
    %v69 = vpop.f32.mrf.mxu0
    %v70 = vadd.f32 %v48, %v69
    %71 = vdwg.mxu0
    %v72 = vmax.f32 %v70, 0.0
    %s73 = scalar_lea.vmem %s1, 80
    %v74 = vld [vmem:[%s73] sm:$0xff]
    %v75 = vld [vmem:[%s73 + $0x8] sm:$0xff]
    %v76 = vld [vmem:[%s73 + $0x10] sm:$0xff]
    %v77 = vld [vmem:[%s73 + $0x18] sm:$0xff]
    %v78 = vld [vmem:[%s73 + $0x20] sm:$0x1]
    %v79 = vperm.slane %v78, 0
    %v81 = vsel %vm17, %v72, 0
    %83 = vmatpush.msra.mxu0 0.0
    %84 = vmatpush.msra.mxu0 0.0
    %85 = vmatpush.msra.mxu0 0.0
    %86 = vmatpush.msra.mxu0 0.0
    %87 = vmatpush.msra.mxu0 0.0
    %88 = vmatpush.msra.mxu0 0.0
    %89 = vmatpush.msra.mxu0 0.0
    %90 = vmatpush.msra.mxu0 0.0
    %91 = vmatpush.msra.mxu0 0.0
    %92 = vmatpush.msra.mxu0 0.0
    %93 = vmatpush.msra.mxu0 0.0
    %94 = vmatpush.msra.mxu0 0.0
    %95 = vmatpush.msra.mxu0 %v77
    %96 = vmatpush.msra.mxu0 %v76
    %97 = vmatpush.msra.mxu0 %v75
    %98 = vmatpush.msra.mxu0 %v74
    %99 = vmatmul.f32.gmra.mxu0 %v81
    %v100 = vpop.f32.mrf.mxu0
    %v101 = vadd.f32 %v79, %v100
    %102 = vdwg.mxu0
    %v103 = vmax.f32 %v101, 0.0
    %s104 = scalar_lea.vmem %s1, 120
    %v105 = vld [vmem:[%s104] sm:$0xff]
    %v106 = vld [vmem:[%s104 + $0x8] sm:$0xff]
    %v107 = vld [vmem:[%s104 + $0x10] sm:$0xff]
    %v108 = vld [vmem:[%s104 + $0x18] sm:$0xff]
    %v109 = vld [vmem:[%s104 + $0x20] sm:$0x1]
    %v110 = vperm.slane %v109, 0
    %v112 = vsel %vm17, %v103, 0
    %114 = vmatpush.msra.mxu0 0.0
    %115 = vmatpush.msra.mxu0 0.0
    %116 = vmatpush.msra.mxu0 0.0
    %117 = vmatpush.msra.mxu0 0.0
    %118 = vmatpush.msra.mxu0 0.0
    %119 = vmatpush.msra.mxu0 0.0
    %120 = vmatpush.msra.mxu0 0.0
    %121 = vmatpush.msra.mxu0 0.0
    %122 = vmatpush.msra.mxu0 0.0
    %123 = vmatpush.msra.mxu0 0.0
    %124 = vmatpush.msra.mxu0 0.0
    %125 = vmatpush.msra.mxu0 0.0
    %126 = vmatpush.msra.mxu0 %v108
    %127 = vmatpush.msra.mxu0 %v107
    %128 = vmatpush.msra.mxu0 %v106
    %129 = vmatpush.msra.mxu0 %v105
    %130 = vmatmul.f32.gmra.mxu0 %v112
    %v131 = vpop.f32.mrf.mxu0
    %v132 = vadd.f32 %v110, %v131
    %133 = vdwg.mxu0
    %v134 = vsub.f32 %v12, %v132
    %s135 = scalar_lea.vmem %s1, 160
    %v136 = vld [vmem:[%s135] sm:$0xff]
    %v137 = vld [vmem:[%s135 + $0x8] sm:$0xff]
    %v138 = vld [vmem:[%s135 + $0x10] sm:$0xff]
    %v139 = vld [vmem:[%s135 + $0x18] sm:$0xff]
    %v141 = vsel %vm17, %v134, 0
    %143 = vmatpush.msra.mxu0 0.0
    %144 = vmatpush.msra.mxu0 0.0
    %145 = vmatpush.msra.mxu0 0.0
    %146 = vmatpush.msra.mxu0 0.0
    %147 = vmatpush.msra.mxu0 0.0
    %148 = vmatpush.msra.mxu0 0.0
    %149 = vmatpush.msra.mxu0 0.0
    %150 = vmatpush.msra.mxu0 0.0
    %151 = vmatpush.msra.mxu0 0.0
    %152 = vmatpush.msra.mxu0 0.0
    %153 = vmatpush.msra.mxu0 0.0
    %154 = vmatpush.msra.mxu0 0.0
    %155 = vmatpush.msra.mxu0 %v139
    %156 = vmatpush.msra.mxu0 %v138
    %157 = vmatpush.msra.mxu0 %v137
    %158 = vmatpush.msra.mxu0 %v136
    %159 = vmatmul.f32.gmra.mxu0 %v141
    %v160 = vpop.f32.mrf.mxu0
    %v161 = vadd.f32 0.0, %v160
    %162 = vdwg.mxu0
    %v163 = vmax.f32 %v161, 0.0
    %s164 = scalar_lea.vmem %s1, 200
    %v165 = vld [vmem:[%s164] sm:$0xff]
    %v166 = vld [vmem:[%s164 + $0x8] sm:$0xff]
    %v167 = vld [vmem:[%s164 + $0x10] sm:$0xff]
    %v168 = vld [vmem:[%s164 + $0x18] sm:$0xff]
    %v169 = vld [vmem:[%s164 + $0x20] sm:$0x1]
    %v170 = vperm.slane %v169, 0
    %v172 = vsel %vm17, %v163, 0
    %174 = vmatpush.msra.mxu0 0.0
    %175 = vmatpush.msra.mxu0 0.0
    %176 = vmatpush.msra.mxu0 0.0
    %177 = vmatpush.msra.mxu0 0.0
    %178 = vmatpush.msra.mxu0 0.0
    %179 = vmatpush.msra.mxu0 0.0
    %180 = vmatpush.msra.mxu0 0.0
    %181 = vmatpush.msra.mxu0 0.0
    %182 = vmatpush.msra.mxu0 0.0
    %183 = vmatpush.msra.mxu0 0.0
    %184 = vmatpush.msra.mxu0 0.0
    %185 = vmatpush.msra.mxu0 0.0
    %186 = vmatpush.msra.mxu0 %v168
    %187 = vmatpush.msra.mxu0 %v167
    %188 = vmatpush.msra.mxu0 %v166
    %189 = vmatpush.msra.mxu0 %v165
    %190 = vmatmul.f32.gmra.mxu0 %v172
    %v191 = vpop.f32.mrf.mxu0
    %v192 = vadd.f32 %v170, %v191
    %193 = vdwg.mxu0
    %v194 = vmax.f32 %v192, 0.0
    %s195 = scalar_lea.vmem %s1, 240
    %v196 = vld [vmem:[%s195] sm:$0xff]
    %v197 = vld [vmem:[%s195 + $0x8] sm:$0xff]
    %v198 = vld [vmem:[%s195 + $0x10] sm:$0xff]
    %v199 = vld [vmem:[%s195 + $0x18] sm:$0xff]
    %v200 = vld [vmem:[%s195 + $0x20] sm:$0x1]
    %v201 = vperm.slane %v200, 0
    %v203 = vsel %vm17, %v194, 0
    %205 = vmatpush.msra.mxu0 0.0
    %206 = vmatpush.msra.mxu0 0.0
    %207 = vmatpush.msra.mxu0 0.0
    %208 = vmatpush.msra.mxu0 0.0
    %209 = vmatpush.msra.mxu0 0.0
    %210 = vmatpush.msra.mxu0 0.0
    %211 = vmatpush.msra.mxu0 0.0
    %212 = vmatpush.msra.mxu0 0.0
    %213 = vmatpush.msra.mxu0 0.0
    %214 = vmatpush.msra.mxu0 0.0
    %215 = vmatpush.msra.mxu0 0.0
    %216 = vmatpush.msra.mxu0 0.0
    %217 = vmatpush.msra.mxu0 %v199
    %218 = vmatpush.msra.mxu0 %v198
    %219 = vmatpush.msra.mxu0 %v197
    %220 = vmatpush.msra.mxu0 %v196
    %221 = vmatmul.f32.gmra.mxu0 %v203
    %v222 = vpop.f32.mrf.mxu0
    %v223 = vadd.f32 %v201, %v222
    %224 = vdwg.mxu0
    %v225 = vmax.f32 %v223, 0.0
    %s226 = scalar_lea.vmem %s1, 280
    %v227 = vld [vmem:[%s226] sm:$0xff]
    %v228 = vld [vmem:[%s226 + $0x8] sm:$0xff]
    %v229 = vld [vmem:[%s226 + $0x10] sm:$0xff]
    %v230 = vld [vmem:[%s226 + $0x18] sm:$0xff]
    %v231 = vld [vmem:[%s226 + $0x20] sm:$0x1]
    %v232 = vperm.slane %v231, 0
    %v234 = vsel %vm17, %v225, 0
    %236 = vmatpush.msra.mxu0 0.0
    %237 = vmatpush.msra.mxu0 0.0
    %238 = vmatpush.msra.mxu0 0.0
    %239 = vmatpush.msra.mxu0 0.0
    %240 = vmatpush.msra.mxu0 0.0
    %241 = vmatpush.msra.mxu0 0.0
    %242 = vmatpush.msra.mxu0 0.0
    %243 = vmatpush.msra.mxu0 0.0
    %244 = vmatpush.msra.mxu0 0.0
    %245 = vmatpush.msra.mxu0 0.0
    %246 = vmatpush.msra.mxu0 0.0
    %247 = vmatpush.msra.mxu0 0.0
    %248 = vmatpush.msra.mxu0 %v230
    %249 = vmatpush.msra.mxu0 %v229
    %250 = vmatpush.msra.mxu0 %v228
    %251 = vmatpush.msra.mxu0 %v227
    %252 = vmatmul.f32.gmra.mxu0 %v234
    %v253 = vpop.f32.mrf.mxu0
    %v254 = vadd.f32 %v232, %v253
    %255 = vdwg.mxu0
    %v256 = vadd.f32 %v132, %v254
    %257 = vst.msk [vmem:[#allocation2] sm:$0xff] %vm17, %v256
    // Predicated region
    $region10: #{tpu_custom_call.1} parent=1 // pred_check
      _
    $region11: #{tpu_custom_call.1} parent=1 // pred_check_branch
      %259 = sbr.rel (0) target = $region13
    $region12: #{tpu_custom_call.1} parent=1 // pred_region
      %261 = vsyncadd [#allocation3], 0
      %s263 = sshll.u32 [#allocation2], 4
      %s264 = int_to_ptr.vmem [resolvable:$true] %s263
      %s265 = sshll.u32 %s2, 4
      %s266 = int_to_ptr.hbm [resolvable:$true] %s265
      %268 = dma.vmem_to_hbm [thread:$0]  %s264, 128, %s266, [#allocation3]
    $region13: #{tpu_custom_call.1} parent=1 // pred_fallthru
      _
    // Predicated region
    $region14: #{tpu_custom_call.1} parent=1 // pred_check
      _
    $region15: #{tpu_custom_call.1} parent=1 // pred_check_branch
      %270 = sbr.rel (0) target = $region17
    $region16: #{tpu_custom_call.1} parent=1 // pred_region
      %272 = dma.done [#allocation3], 128
    $region17: #{tpu_custom_call.1} parent=1 // pred_fallthru
      _
    %273 = vsyncpa [#allocation3], 1

</llo_original>
